<compile_context>
chip_gen: v5e
topology: v5e:2x2
jax: 0.10.0
libtpu: 0.0.40
codegen_flags: <defaults>
</compile_context>

<pallas_src>
import functools
import math

import jax
import jax.numpy as jnp
from jax import lax
from jax.experimental import pallas as pl
from jax.experimental.pallas import tpu as pltpu


# ---------------------------------------------------------------------------
# Tiled matmul (qkv_proj / o_proj). bf16 operands on the MXU, f32 accumulator.
# ---------------------------------------------------------------------------
def _matmul_kernel(a_ref, b_ref, o_ref, acc_ref):
    @pl.when(pl.program_id(2) == 0)
    def _init():
        acc_ref[...] = jnp.zeros_like(acc_ref)

    acc_ref[...] += jnp.dot(a_ref[...], b_ref[...],
                            preferred_element_type=jnp.float32)

    @pl.when(pl.program_id(2) == pl.num_programs(2) - 1)
    def _finalize():
        o_ref[...] = acc_ref[...].astype(o_ref.dtype)


def matmul(a, b, *, tm=256, tn=512, tk=512):
    """a: (M, K), b: (K, N) -> (M, N), accumulated in f32."""
    M, K = a.shape
    K2, N = b.shape
    assert K == K2
    tm, tn, tk = min(tm, M), min(tn, N), min(tk, K)
    # TODO(synk): no padding path; shapes must divide the tiles.
    assert M % tm == 0 and N % tn == 0 and K % tk == 0, (M, N, K, tm, tn, tk)

    return pl.pallas_call(
        _matmul_kernel,
        out_shape=jax.ShapeDtypeStruct((M, N), a.dtype),
        grid_spec=pltpu.PrefetchScalarGridSpec(
            num_scalar_prefetch=0,
            grid=(M // tm, N // tn, K // tk),
            in_specs=[
                pl.BlockSpec((tm, tk), lambda i, j, k: (i, k)),
                pl.BlockSpec((tk, tn), lambda i, j, k: (k, j)),
            ],
            out_specs=pl.BlockSpec((tm, tn), lambda i, j, k: (i, j)),
            scratch_shapes=[pltpu.VMEM((tm, tn), jnp.float32)],
        ),
        compiler_params=pltpu.CompilerParams(
            dimension_semantics=("parallel", "parallel", "arbitrary")),
    )(a, b)


# ---------------------------------------------------------------------------
# Fused RoPE + causal GQA flash attention over the fused qkv projection buffer.
# Grid: (B, Hkv, T) where T enumerates only lower-triangular (qi, ki) tile pairs
# via scalar-prefetched qi_map / ki_map.
# ---------------------------------------------------------------------------
def _flash_kernel(qi_ref, ki_ref,                       # scalar-prefetch schedule (SMEM)
                  q_ref, k_ref, v_ref,                  # views into the fused qkv buffer
                  cos_q_ref, sin_q_ref, cos_k_ref, sin_k_ref,
                  o_ref,
                  q_rot, m_sc, l_sc, acc_sc,
                  *, tq, head_dim, group, scale):
    step = pl.program_id(2)
    qi = qi_ref[step]
    ki = ki_ref[step]
    D = head_dim
    half = D // 2

    # First KV step of this q tile: reset online-softmax state and apply RoPE
    # (rotate_half via XLU roll; sign folded into sin) + softmax scale to Q once.
    @pl.when(ki == 0)
    def _init():
        m_sc[...] = jnp.full_like(m_sc, -1e30)
        l_sc[...] = jnp.zeros_like(l_sc)
        acc_sc[...] = jnp.zeros_like(acc_sc)
        q = q_ref[...].astype(jnp.float32)               # (tq, group*D)
        cos_q = cos_q_ref[...]                           # (tq, D) f32
        sin_q = sin_q_ref[...]                           # sign already folded in
        for g in range(group):
            xg = q[:, g * D:(g + 1) * D]
            rg = (xg * cos_q + pltpu.roll(xg, shift=half, axis=1) * sin_q) * scale
            q_rot[g * tq:(g + 1) * tq, :] = rg.astype(q_rot.dtype)

    def _step(masked):
        k = k_ref[...].astype(jnp.float32)               # (tk, D)
        kr = (k * cos_k_ref[...] +
              pltpu.roll(k, shift=half, axis=1) * sin_k_ref[...]).astype(k_ref.dtype)
        v = v_ref[...]                                   # (tk, D)
        q = q_rot[...]                                   # (group*tq, D), rotated + scaled
        s = lax.dot_general(q, kr, (((1,), (1,)), ((), ())),
                            preferred_element_type=jnp.float32)
        if masked:                                       # diagonal tile only
            row = lax.broadcasted_iota(jnp.int32, s.shape, 0)
            col = lax.broadcasted_iota(jnp.int32, s.shape, 1)
            s = jnp.where(col <= (row % tq), s, -1e30)
        m_prev = m_sc[...]
        m_new = jnp.maximum(m_prev, s.max(axis=-1, keepdims=True))
        alpha = jnp.exp(m_prev - m_new)
        p = jnp.exp(s - m_new)
        l_sc[...] = alpha * l_sc[...] + p.sum(axis=-1, keepdims=True)
        acc_sc[...] = alpha * acc_sc[...] + jnp.dot(
            p.astype(v.dtype), v, preferred_element_type=jnp.float32)
        m_sc[...] = m_new

    @pl.when(ki < qi)            # interior tile: fully visible, no mask work
    def _interior():
        _step(masked=False)

    @pl.when(ki == qi)           # diagonal tile: masked compute, then finalize
    def _diag_and_finalize():
        _step(masked=True)
        out = acc_sc[...] / l_sc[...]                    # (group*tq, D)
        for g in range(group):
            o_ref[:, g * D:(g + 1) * D] = (
                out[g * tq:(g + 1) * tq, :].astype(o_ref.dtype))


def flash_attention_fused(qkv, cos, sin, *, num_heads, num_kv_heads, head_dim,
                          tile_seq=256):
    """qkv: (B, S, (Hq+2*Hkv)*D) bf16; cos/sin: (S, D) f32 (sin pre-signed).

    Returns attention output in (B, S, Hq*D) layout (ready for o_proj)."""
    B, S, _ = qkv.shape
    D = head_dim
    Hq, Hkv = num_heads, num_kv_heads
    group = Hq // Hkv
    assert Hq == Hkv * group
    # TODO(synk): lane padding for head_dim not a multiple of 128 (Phi3-mini D=96).
    assert D % 128 == 0, "fused qkv path requires head_dim % 128 == 0"
    t = min(tile_seq, S)
    assert S % t == 0 and t % 8 == 0, (S, t)
    nq = S // t

    # Flat lower-triangular (qi, ki) schedule: masked KV tiles never DMA'd/stepped.
    qi_list, ki_list = [], []
    for qi in range(nq):
        for ki in range(qi + 1):
            qi_list.append(qi)
            ki_list.append(ki)
    qi_map = jnp.asarray(qi_list, dtype=jnp.int32)
    ki_map = jnp.asarray(ki_list, dtype=jnp.int32)
    T = int(qi_map.shape[0])

    scale = 1.0 / math.sqrt(D)
    kernel = functools.partial(_flash_kernel, tq=t, head_dim=D, group=group,
                               scale=scale)

    q_spec = pl.BlockSpec((None, t, group * D),
                          lambda b, h, s, qi_m, ki_m: (b, qi_m[s], h))
    k_spec = pl.BlockSpec((None, t, D),
                          lambda b, h, s, qi_m, ki_m: (b, ki_m[s], Hq + h))
    v_spec = pl.BlockSpec((None, t, D),
                          lambda b, h, s, qi_m, ki_m: (b, ki_m[s], Hq + Hkv + h))
    cos_q_spec = pl.BlockSpec((t, D), lambda b, h, s, qi_m, ki_m: (qi_m[s], 0))
    sin_q_spec = pl.BlockSpec((t, D), lambda b, h, s, qi_m, ki_m: (qi_m[s], 0))
    cos_k_spec = pl.BlockSpec((t, D), lambda b, h, s, qi_m, ki_m: (ki_m[s], 0))
    sin_k_spec = pl.BlockSpec((t, D), lambda b, h, s, qi_m, ki_m: (ki_m[s], 0))
    out_spec = pl.BlockSpec((None, t, group * D),
                            lambda b, h, s, qi_m, ki_m: (b, qi_m[s], h))

    return pl.pallas_call(
        kernel,
        out_shape=jax.ShapeDtypeStruct((B, S, Hq * D), qkv.dtype),
        grid_spec=pltpu.PrefetchScalarGridSpec(
            num_scalar_prefetch=2,
            grid=(B, Hkv, T),
            in_specs=[q_spec, k_spec, v_spec,
                      cos_q_spec, sin_q_spec, cos_k_spec, sin_k_spec],
            out_specs=out_spec,
            scratch_shapes=[
                pltpu.VMEM((group * t, D), qkv.dtype),    # RoPE'd + scaled Q
                pltpu.VMEM((group * t, 1), jnp.float32),  # running max
                pltpu.VMEM((group * t, 1), jnp.float32),  # running denom
                pltpu.VMEM((group * t, D), jnp.float32),  # output accumulator
            ],
        ),
        compiler_params=pltpu.CompilerParams(
            dimension_semantics=("parallel", "parallel", "arbitrary")),
    )(qi_map, ki_map, qkv, qkv, qkv, cos, sin, cos, sin)


# ---------------------------------------------------------------------------
# Full module forward.
# ---------------------------------------------------------------------------
def phi3_fast_flash_attention2(hidden_states, w_qkv, w_o, position_ids, *,
                               num_heads, num_kv_heads, rope_theta=10000.0,
                               tile_seq=256):
    """hidden_states: (B, S, H); w_qkv: (H, (nq+2*nkv)*hd); w_o: (nq*hd, H)."""
    B, S, H = hidden_states.shape
    head_dim = H // num_heads
    q_size = num_heads * head_dim

    # qkv projection (Phi3: no bias).
    qkv = matmul(hidden_states.reshape(B * S, H), w_qkv).reshape(B, S, -1)

    # Rotary tables in f32.  rotate_half's +/- sign is folded into sin so the
    # kernel only needs a lane-roll.
    # TODO(synk): LongRoPE short/long factor selection not implemented.
    # TODO(synk): position_ids assumed (S,) shared across the batch (no left padding).
    inv_freq = 1.0 / (rope_theta ** (
        jnp.arange(0, head_dim, 2, dtype=jnp.float32) / head_dim))
    freqs = position_ids.astype(jnp.float32)[:, None] * inv_freq[None, :]
    emb = jnp.concatenate([freqs, freqs], axis=-1)           # (S, head_dim)
    cos = jnp.cos(emb)
    sign = jnp.concatenate([-jnp.ones((head_dim // 2,), jnp.float32),
                            jnp.ones((head_dim // 2,), jnp.float32)])
    sin = jnp.sin(emb) * sign

    # Fused RoPE + causal GQA flash attention; output already in (B, S, Hq*hd).
    attn = flash_attention_fused(qkv, cos, sin, num_heads=num_heads,
                                 num_kv_heads=num_kv_heads, head_dim=head_dim,
                                 tile_seq=tile_seq)

    # o_proj (no bias).
    out = matmul(attn.reshape(B * S, q_size), w_o)
    return out.reshape(B, S, H)


# ---------------------------------------------------------------------------
# Pure-jnp reference (f32 math over the same bf16 parameters/activations).
# ---------------------------------------------------------------------------
def _reference_forward(hidden_states, w_qkv, w_o, position_ids,
                       num_heads, num_kv_heads, rope_theta):
    B, S, H = hidden_states.shape
    D = H // num_heads
    qs, ks = num_heads * D, num_kv_heads * D
    x = hidden_states.astype(jnp.float32)
    qkv = (x.reshape(B * S, H) @ w_qkv.astype(jnp.float32)).reshape(B, S, -1)
    q = qkv[..., :qs].reshape(B, S, num_heads, D).transpose(0, 2, 1, 3)
    k = qkv[..., qs:qs + ks].reshape(B, S, num_kv_heads, D).transpose(0, 2, 1, 3)
    v = qkv[..., qs + ks:].reshape(B, S, num_kv_heads, D).transpose(0, 2, 1, 3)

    inv_freq = 1.0 / (rope_theta ** (jnp.arange(0, D, 2, dtype=jnp.float32) / D))
    freqs = position_ids.astype(jnp.float32)[:, None] * inv_freq[None, :]
    emb = jnp.concatenate([freqs, freqs], axis=-1)
    cos, sin = jnp.cos(emb), jnp.sin(emb)

    def rope(t):
        t1, t2 = t[..., :D // 2], t[..., D // 2:]
        return t * cos + jnp.concatenate([-t2, t1], axis=-1) * sin

    q, k = rope(q), rope(k)
    group = num_heads // num_kv_heads
    k = jnp.repeat(k, group, axis=1)
    v = jnp.repeat(v, group, axis=1)

    s = jnp.einsum("bhqd,bhkd->bhqk", q, k) / math.sqrt(D)
    mask = jnp.tril(jnp.ones((S, S), dtype=bool))
    s = jnp.where(mask[None, None], s, -jnp.inf)
    p = jax.nn.softmax(s, axis=-1)
    o = jnp.einsum("bhqk,bhkd->bhqd", p, v)
    o = o.transpose(0, 2, 1, 3).reshape(B * S, num_heads * D)
    return (o @ w_o.astype(jnp.float32)).reshape(B, S, H)


if __name__ == "__main__":
    # Small Phi3-shaped config (head_dim kept at 128 for the fused-qkv lane layout):
    # batch=2, seq=16, hidden=512, 4 query heads, 2 kv heads.
    batch, seq = 2, 16
    num_heads, num_kv_heads, head_dim = 4, 2, 128
    hidden = num_heads * head_dim
    op_size = (num_heads + 2 * num_kv_heads) * head_dim
    dtype = jnp.bfloat16

    key = jax.random.PRNGKey(0)
    k_x, k_qkv, k_o = jax.random.split(key, 3)

    hidden_states = jax.random.normal(
        k_x, (batch, seq, hidden), dtype=jnp.float32).astype(dtype)
    w_qkv = (jax.random.normal(k_qkv, (hidden, op_size), dtype=jnp.float32)
             * (1.0 / math.sqrt(hidden))).astype(dtype)
    w_o = (jax.random.normal(k_o, (num_heads * head_dim, hidden), dtype=jnp.float32)
           * (1.0 / math.sqrt(num_heads * head_dim))).astype(dtype)
    position_ids = jnp.arange(seq, dtype=jnp.int32)

    out = phi3_fast_flash_attention2(
        hidden_states, w_qkv, w_o, position_ids,
        num_heads=num_heads, num_kv_heads=num_kv_heads, rope_theta=10000.0,
        tile_seq=8)  # small tile so both interior and diagonal paths are exercised
    jax.block_until_ready(out)
    assert out.shape == (batch, seq, hidden)

    ref = _reference_forward(hidden_states, w_qkv, w_o, position_ids,
                             num_heads, num_kv_heads, 10000.0)
    max_err = float(jnp.max(jnp.abs(out.astype(jnp.float32) - ref)))
    assert max_err < 0.1, f"max abs error vs reference too large: {max_err}"

    print("KERNEL_OK")
</pallas_src>

<mosaic_0001>
module attributes {stable_mosaic.version = 11 : i64} {
  func.func @_matmul_kernel(%arg0: i32, %arg1: i32, %arg2: i32, %arg3: memref<32x512xbf16, #tpu.memory_space<vmem>>, %arg4: memref<512x512xbf16, #tpu.memory_space<vmem>>, %arg5: memref<32x512xbf16, #tpu.memory_space<vmem>>, %arg6: memref<32x512xf32, #tpu.memory_space<vmem>>) attributes {dimension_semantics = [#tpu.dimension_semantics<parallel>, #tpu.dimension_semantics<parallel>, #tpu.dimension_semantics<arbitrary>], iteration_bounds = array<i64: 1, 2, 1>, scalar_prefetch = 0 : i64, scratch_operands = 1 : i64, tpu.core_type = #tpu.core_type<tc>, window_params = [{transform_indices = @transform_0, window_bounds = array<i64: 32, 512>}, {transform_indices = @transform_1, window_bounds = array<i64: 512, 512>}, {transform_indices = @transform_2, window_bounds = array<i64: 32, 512>}]} {
    %c0_i32 = arith.constant 0 : i32
    %0 = arith.cmpi eq, %arg2, %c0_i32 : i32
    %1 = arith.extui %0 : i1 to i32
    %c0_i32_0 = arith.constant 0 : i32
    %2 = arith.cmpi ne, %1, %c0_i32_0 : i32
    scf.if %2 {
      %cst_10 = arith.constant 0.000000e+00 : f32
      %12 = vector.broadcast %cst_10 : f32 to vector<32x512xf32>
      %c0_11 = arith.constant 0 : index
      %c0_12 = arith.constant 0 : index
      %13 = vector.load %arg6[%c0_11, %c0_12] : memref<32x512xf32, #tpu.memory_space<vmem>>, vector<32x512xf32>
      tpu.vector_store %arg6[%c0_11, %c0_12], %12 {strides = array<i32>} : memref<32x512xf32, #tpu.memory_space<vmem>>, vector<32x512xf32>,
    } else {
    }
    %c0 = arith.constant 0 : index
    %c0_1 = arith.constant 0 : index
    %3 = vector.load %arg6[%c0, %c0_1] : memref<32x512xf32, #tpu.memory_space<vmem>>, vector<32x512xf32>
    %c0_2 = arith.constant 0 : index
    %c0_3 = arith.constant 0 : index
    %4 = vector.load %arg3[%c0_2, %c0_3] : memref<32x512xbf16, #tpu.memory_space<vmem>>, vector<32x512xbf16>
    %c0_4 = arith.constant 0 : index
    %c0_5 = arith.constant 0 : index
    %5 = vector.load %arg4[%c0_4, %c0_5] : memref<512x512xbf16, #tpu.memory_space<vmem>>, vector<512x512xbf16>
    %cst = arith.constant dense<0.000000e+00> : vector<32x512xf32>
    %6 = tpu.matmul %4, %5, %cst {dimension_numbers = #tpu.dot_dimension_numbers<[1], [0], [0], [1], [0, 0, 1, 1], [], []>} : vector<32x512xbf16>, vector<512x512xbf16>, vector<32x512xf32> -> vector<32x512xf32>
    %7 = arith.addf %3, %6 : vector<32x512xf32>
    %c0_6 = arith.constant 0 : index
    %c0_7 = arith.constant 0 : index
    %8 = vector.load %arg6[%c0_6, %c0_7] : memref<32x512xf32, #tpu.memory_space<vmem>>, vector<32x512xf32>
    tpu.vector_store %arg6[%c0_6, %c0_7], %7 {strides = array<i32>} : memref<32x512xf32, #tpu.memory_space<vmem>>, vector<32x512xf32>,
    %c0_i32_8 = arith.constant 0 : i32
    %9 = arith.cmpi eq, %arg2, %c0_i32_8 : i32
    %10 = arith.extui %9 : i1 to i32
    %c0_i32_9 = arith.constant 0 : i32
    %11 = arith.cmpi ne, %10, %c0_i32_9 : i32
    scf.if %11 {
      %c0_10 = arith.constant 0 : index
      %c0_11 = arith.constant 0 : index
      %12 = vector.load %arg6[%c0_10, %c0_11] : memref<32x512xf32, #tpu.memory_space<vmem>>, vector<32x512xf32>
      %13 = arith.truncf %12 : vector<32x512xf32> to vector<32x512xbf16>
      %c0_12 = arith.constant 0 : index
      %c0_13 = arith.constant 0 : index
      %14 = vector.load %arg5[%c0_12, %c0_13] : memref<32x512xbf16, #tpu.memory_space<vmem>>, vector<32x512xbf16>
      tpu.vector_store %arg5[%c0_12, %c0_13], %13 {strides = array<i32>} : memref<32x512xbf16, #tpu.memory_space<vmem>>, vector<32x512xbf16>,
    } else {
    }
    return
  }
  func.func @transform_0(%arg0: i32, %arg1: i32, %arg2: i32) -> (i32, i32) {
    %c0_i32 = arith.constant 0 : i32
    return %arg0, %arg2 : i32, i32
  }
  func.func @transform_1(%arg0: i32, %arg1: i32, %arg2: i32) -> (i32, i32) {
    %c0_i32 = arith.constant 0 : i32
    return %arg2, %arg1 : i32, i32
  }
  func.func @transform_2(%arg0: i32, %arg1: i32, %arg2: i32) -> (i32, i32) {
    %c0_i32 = arith.constant 0 : i32
    return %arg0, %arg1 : i32, i32
  }
}

</mosaic_0001>

<llo_original>
// kernel: tpu_custom_call.1
$region0: #{tpu_custom_call.1}
  #allocation0 [shape = 'u32[]', space=smem, size = 0x4, offset = 0x4, fixed_abs, tag = 'smem constant byte address 0x4 - core index']
  #allocation1 [shape = 'u32[72,128]{1,0:T(1,128)}', space=vmem, size = 0x9000, scoped, tag = 'internal scratch']
  #allocation2 [shape = 'f32[32,512]{1,0:T(8,128)}', space=vmem, size = 0x10000, scoped, tag = 'scratch operand']
  %s0 = inlined_call_operand.hbm [shape: bf16[32,512], index: 0, kind: input, shape index: {}]
  %s1 = inlined_call_operand.hbm [shape: bf16[512,1024], index: 1, kind: input, shape index: {}]
  %s2 = inlined_call_operand.hbm [shape: bf16[32,1024], index: 2, kind: output, shape index: {}]
  %s3 = sld [smem:[#allocation0]]
  $region57: #{tpu_custom_call.1} parent=0
    _
  %s5 = ssub.s32 1, %s3
  %s6 = scalar_select 0, %s5, %s3
  $region1: #{tpu_custom_call.1} parent=0
    #allocation3 [shape = 'u8[32768]{0}', space=vmem, size = 0x8000, scoped, tag = 'input window, operand 0, single buffered']
    #allocation4 [shape = 's32[2]{0}', space=sflag, size = 0x8, scoped, tag = 'scoped memory for tpu_custom_call.1']
    #allocation5 [shape = 's32[2]{0}', space=sflag, size = 0x8, scoped, tag = 'scoped memory for tpu_custom_call.1']
    #allocation6 [shape = 'u8[1048576]{0}', space=vmem, size = 0x100000, scoped, tag = 'input window, operand 1']
    #allocation7 [shape = 's32[2]{0}', space=sflag, size = 0x8, scoped, tag = 'scoped memory for tpu_custom_call.1']
    #allocation8 [shape = 'u8[65536]{0}', space=vmem, size = 0x10000, scoped, tag = 'output window, operand 0']
    %7 = vsyncpa [#allocation4], 0
    %8 = vsyncpa [#allocation7], 0
    %s9 = scalar_lea.sflag [#allocation7], 1
    %10 = vsyncpa %s9, 0
    %11 = vsyncpa [#allocation5], 0
    %s12 = scalar_lea.sflag [#allocation5], 1
    %13 = vsyncpa %s12, 0
    loop: start=0, step=1, limit=4
    $region2: #{tpu_custom_call.1} parent=1 // loop_pre_header
      _
    $region3: #{tpu_custom_call.1} parent=1 // loop_header
      %s15 = sphi 0, %s19
      %p16 = scmp.ge.s32.totalorder %s15, 4
      %s22 = sphi 0, %s41
      %s23 = sphi 0, %s37
      %s24 = sphi 0, %s33
      %s25 = sphi 0, %s22
      %s26 = sphi 0, %s23
      %s27 = sphi 0, %s24
      %s28 = sphi 0, %s25
      %s29 = sphi 0, %s26
      %s30 = sphi 0, %s27
      %s46 = sphi 0, %s48
      %s49 = sphi 0, %s46
      %s50 = sphi 0, %s49
      %s66 = sphi 0, %s50
      %s74 = sphi 0, %s76
      %s77 = sphi 0, %s74
      %s78 = sphi 0, %s77
      %s94 = sphi 0, %s78
      %s102 = sphi 0, %s104
      %s105 = sphi 0, %s102
      %s106 = sphi 0, %s105
      %s122 = sphi 0, %s106
    $region4: #{tpu_custom_call.1} parent=1 // loop_header_branch
      %18 = sbr.rel (%p16) target = $region8
    $region5: #{tpu_custom_call.1} parent=1 // loop_body
      %s20 = ssub.s32 %s15, 1
      %s21 = ssub.s32 %s15, 2
      %s31 = sadd.s32 1, %s24
      %p32 = scmp.ge.s32.totalorder %s31, 1
      %s33 = scalar_select %p32, 0, %s31
      %s34 = sadd.s32 1, %s23
      %s35 = scalar_select %p32, %s34, %s23
      %p36 = scmp.ge.s32.totalorder %s35, 2
      %s37 = scalar_select %p36, 0, %s35
      %s38 = sadd.s32 1, %s22
      %s39 = scalar_select %p36, %s38, %s22
      %p40 = scmp.ge.s32.totalorder %s39, 1
      %s41 = scalar_select %p40, 0, %s39
      %s42 = ssub.s32 %s22, %s41
      %s43 = ssub.s32 %s24, %s33
      %s44 = sor.u32 %s42, %s43
      %p45 = scmp.eq.s32.totalorder %s44, 0
      %s47 = sadd.s32 %s46, 1
      %s48 = scalar_select %p45, %s46, %s47
      %p51 = pneg %p45
      %p52 = scmp.eq.s32.totalorder %s15, 1
      %p53 = por %p51, %p52
      %p54 = scmp.ne.s32.totalorder %s46, %s49
      %p55 = scmp.eq.s32.totalorder %s15, 0
      %p56 = por %p54, %p55
      %p57 = scmp.ne.s32.totalorder %s46, %s49
      %p58 = scmp.eq.s32.totalorder %s20, 1
      %p59 = por %p57, %p58
      %p60 = scmp.ne.s32.totalorder %s49, %s50
      %p61 = scmp.eq.s32.totalorder %s20, 0
      %p62 = por %p60, %p61
      %p63 = scmp.ne.s32.totalorder %s49, %s50
      %p64 = scmp.eq.s32.totalorder %s21, 1
      %p65 = por %p63, %p64
      %p67 = scmp.ne.s32.totalorder %s50, %s66
      %p68 = scmp.eq.s32.totalorder %s21, 0
      %p69 = por %p67, %p68
      %s70 = ssub.s32 %s24, %s33
      %s71 = ssub.s32 %s23, %s37
      %s72 = sor.u32 %s70, %s71
      %p73 = scmp.eq.s32.totalorder %s72, 0
      %s75 = sadd.s32 %s74, 1
      %s76 = scalar_select %p73, %s74, %s75
      %p79 = pneg %p73
      %p80 = scmp.eq.s32.totalorder %s15, 1
      %p81 = por %p79, %p80
      %p82 = scmp.ne.s32.totalorder %s74, %s77
      %p83 = scmp.eq.s32.totalorder %s15, 0
      %p84 = por %p82, %p83
      %p85 = scmp.ne.s32.totalorder %s74, %s77
      %p86 = scmp.eq.s32.totalorder %s20, 1
      %p87 = por %p85, %p86
      %p88 = scmp.ne.s32.totalorder %s77, %s78
      %p89 = scmp.eq.s32.totalorder %s20, 0
      %p90 = por %p88, %p89
      %p91 = scmp.ne.s32.totalorder %s77, %s78
      %p92 = scmp.eq.s32.totalorder %s21, 1
      %p93 = por %p91, %p92
      %p95 = scmp.ne.s32.totalorder %s78, %s94
      %p96 = scmp.eq.s32.totalorder %s21, 0
      %p97 = por %p95, %p96
      %s98 = ssub.s32 %s22, %s41
      %s99 = ssub.s32 %s23, %s37
      %s100 = sor.u32 %s98, %s99
      %p101 = scmp.eq.s32.totalorder %s100, 0
      %s103 = sadd.s32 %s102, 1
      %s104 = scalar_select %p101, %s102, %s103
      %p107 = pneg %p101
      %p108 = scmp.eq.s32.totalorder %s15, 1
      %p109 = por %p107, %p108
      %p110 = scmp.ne.s32.totalorder %s102, %s105
      %p111 = scmp.eq.s32.totalorder %s15, 0
      %p112 = por %p110, %p111
      %p113 = scmp.ne.s32.totalorder %s102, %s105
      %p114 = scmp.eq.s32.totalorder %s20, 1
      %p115 = por %p113, %p114
      %p116 = scmp.ne.s32.totalorder %s105, %s106
      %p117 = scmp.eq.s32.totalorder %s20, 0
      %p118 = por %p116, %p117
      %p119 = scmp.ne.s32.totalorder %s105, %s106
      %p120 = scmp.eq.s32.totalorder %s21, 1
      %p121 = por %p119, %p120
      %p123 = scmp.ne.s32.totalorder %s106, %s122
      %p124 = scmp.eq.s32.totalorder %s21, 0
      %p125 = por %p123, %p124
      %p126 = scmp.le.s32.totalorder 1, %s15
      %p127 = scmp.lt.s32.totalorder %s15, 3
      %p128 = pnand %p126, %p127
      %p129 = pneg %p128
      // Predicated region
      $region9: #{tpu_custom_call.1} parent=5 // pred_check
        _
      $region10: #{tpu_custom_call.1} parent=5 // pred_check_branch
        %131 = sbr.rel (%p128) target = $region12
      $region11: #{tpu_custom_call.1} parent=5 // pred_region
        %s132 = ssub.s32 %s15, 1
        // Predicated region
        $region13: #{tpu_custom_call.1} parent=11 // pred_check
          %p133 = pneg %p62
        $region14: #{tpu_custom_call.1} parent=11 // pred_check_branch
          %135 = sbr.rel (%p133) target = $region16
        $region15: #{tpu_custom_call.1} parent=11 // pred_region
          %s136 = smul.u32 4, %s25
          %s137 = smul.u32 4, %s27
          %139 = vsyncadd [#allocation4], 0
          %s140 = smul.addr %s136, 4
          %s141 = sadd.s32 %s137, %s140
          %s142 = smul.addr %s141, 4
          %s143 = scalar_lea.hbm %s0, %s142
          %s144 = sshll.u32 %s143, 4
          %s145 = int_to_ptr.hbm [resolvable:$true] %s144
          %s146 = sshll.u32 [#allocation3], 4
          %s147 = int_to_ptr.vmem [resolvable:$true] %s146
          %152 = dma.hbm_to_vmem [thread:$0]  %s145, 1024, %s147, [#allocation4], 256, 256, 16
        $region16: #{tpu_custom_call.1} parent=11 // pred_fallthru
          _
      $region12: #{tpu_custom_call.1} parent=5 // pred_fallthru
        _
      %p153 = scmp.lt.s32.totalorder %s15, 2
      // Predicated region
      $region17: #{tpu_custom_call.1} parent=5 // pred_check
        %p154 = pneg %p153
      $region18: #{tpu_custom_call.1} parent=5 // pred_check_branch
        %156 = sbr.rel (%p154) target = $region20
      $region19: #{tpu_custom_call.1} parent=5 // pred_region
        // Predicated region
        $region21: #{tpu_custom_call.1} parent=19 // pred_check
          %p157 = pneg %p84
        $region22: #{tpu_custom_call.1} parent=19 // pred_check_branch
          %159 = sbr.rel (%p157) target = $region24
        $region23: #{tpu_custom_call.1} parent=19 // pred_region
          %s160 = sand.u32 %s74, 1
          %s161 = scalar_lea.sflag [#allocation7], %s160
          %s162 = sand.u32 %s74, 1
          %s163 = smul.addr %s162, 1024
          %s164 = scalar_lea.vmem [#allocation6], %s163
          %s165 = smul.u32 64, %s24
          %s166 = smul.u32 4, %s23
          %168 = vsyncadd %s161, 0
          %s169 = smul.addr %s165, 8
          %s170 = sadd.s32 %s166, %s169
          %s171 = smul.addr %s170, 4
          %s172 = scalar_lea.hbm %s1, %s171
          %s173 = sshll.u32 %s172, 4
          %s174 = int_to_ptr.hbm [resolvable:$true] %s173
          %s175 = sshll.u32 %s164, 4
          %s176 = int_to_ptr.vmem [resolvable:$true] %s175
          %181 = dma.hbm_to_vmem [thread:$0]  %s174, 16384, %s176, %s161, 512, 256, 16
        $region24: #{tpu_custom_call.1} parent=19 // pred_fallthru
          _
      $region20: #{tpu_custom_call.1} parent=5 // pred_fallthru
        _
      %p182 = scmp.le.s32.totalorder 1, %s15
      %p183 = scmp.lt.s32.totalorder %s15, 3
      %p184 = pnand %p182, %p183
      %p185 = pneg %p184
      // Predicated region
      $region25: #{tpu_custom_call.1} parent=5 // pred_check
        _
      $region26: #{tpu_custom_call.1} parent=5 // pred_check_branch
        %187 = sbr.rel (%p184) target = $region28
      $region27: #{tpu_custom_call.1} parent=5 // pred_region
        %s188 = ssub.s32 %s15, 1
        // Predicated region
        $region29: #{tpu_custom_call.1} parent=27 // pred_check
          %p189 = pneg %p62
        $region30: #{tpu_custom_call.1} parent=27 // pred_check_branch
          %191 = sbr.rel (%p189) target = $region32
        $region31: #{tpu_custom_call.1} parent=27 // pred_region
          %193 = dma.done [#allocation4], 1024
        $region32: #{tpu_custom_call.1} parent=27 // pred_fallthru
          _
        %s194 = sand.u32 %s77, 1
        %s195 = scalar_lea.sflag [#allocation7], %s194
        %s196 = sand.u32 %s77, 1
        %s197 = smul.addr %s196, 1024
        %s198 = scalar_lea.vmem [#allocation6], %s197
        // Predicated region
        $region33: #{tpu_custom_call.1} parent=27 // pred_check
          %p199 = pneg %p90
        $region34: #{tpu_custom_call.1} parent=27 // pred_check_branch
          %201 = sbr.rel (%p199) target = $region36
        $region35: #{tpu_custom_call.1} parent=27 // pred_region
          %203 = dma.done %s195, 16384
        $region36: #{tpu_custom_call.1} parent=27 // pred_fallthru
          _
        %p204 = pneg %p62
        %p205 = pneg %p59
        %s206 = sand.u32 %s77, 1
        %s207 = scalar_lea.sflag [#allocation7], %s206
        %s208 = sand.u32 %s77, 1
        %s209 = smul.addr %s208, 1024
        %s210 = scalar_lea.vmem [#allocation6], %s209
        %p211 = pneg %p90
        %p212 = pneg %p87
        %p213 = pneg %p118
        %p214 = pneg %p115
        %s215 = sand.u32 %s105, 1
        %s216 = scalar_lea.sflag [#allocation5], %s215
        %s217 = sand.u32 %s105, 1
        %s218 = smul.addr %s217, 64
        %s219 = scalar_lea.vmem [#allocation8], %s218
        %s220 = smul.u32 4, %s25
        %s221 = smul.u32 4, %s27
        %s222 = smul.u32 64, %s27
        %s223 = smul.u32 4, %s26
        %s224 = smul.u32 4, %s25
        %s225 = smul.u32 4, %s26
        %p226 = scmp.eq.s32.totalorder %s27, 0
        // Predicated region
        $region37: #{tpu_custom_call.1} parent=27 // pred_check
          %p227 = pneg %p226
        $region38: #{tpu_custom_call.1} parent=27 // pred_check_branch
          %229 = sbr.rel (%p227) target = $region40
        $region39: #{tpu_custom_call.1} parent=27 // pred_region
          %230 = vst [vmem:[#allocation2] sm:$0xff] 0.0
          %231 = vst [vmem:[#allocation2 + $0x8] sm:$0xff] 0.0
          %232 = vst [vmem:[#allocation2 + $0x10] sm:$0xff] 0.0
          %233 = vst [vmem:[#allocation2 + $0x18] sm:$0xff] 0.0
          %234 = vst [vmem:[#allocation2 + $0x20] sm:$0xff] 0.0
          %235 = vst [vmem:[#allocation2 + $0x28] sm:$0xff] 0.0
          %236 = vst [vmem:[#allocation2 + $0x30] sm:$0xff] 0.0
          %237 = vst [vmem:[#allocation2 + $0x38] sm:$0xff] 0.0
          %238 = vst [vmem:[#allocation2 + $0x40] sm:$0xff] 0.0
          %239 = vst [vmem:[#allocation2 + $0x48] sm:$0xff] 0.0
          %240 = vst [vmem:[#allocation2 + $0x50] sm:$0xff] 0.0
          %241 = vst [vmem:[#allocation2 + $0x58] sm:$0xff] 0.0
          %242 = vst [vmem:[#allocation2 + $0x60] sm:$0xff] 0.0
          %243 = vst [vmem:[#allocation2 + $0x68] sm:$0xff] 0.0
          %244 = vst [vmem:[#allocation2 + $0x70] sm:$0xff] 0.0
          %245 = vst [vmem:[#allocation2 + $0x78] sm:$0xff] 0.0
        $region40: #{tpu_custom_call.1} parent=27 // pred_fallthru
          _
        %v246 = vld [vmem:[#allocation2] sm:$0xff]
        %v247 = vld [vmem:[#allocation2 + $0x8] sm:$0xff]
        %v248 = vld [vmem:[#allocation2 + $0x10] sm:$0xff]
        %v249 = vld [vmem:[#allocation2 + $0x18] sm:$0xff]
        %v250 = vld [vmem:[#allocation2 + $0x20] sm:$0xff]
        %v251 = vld [vmem:[#allocation2 + $0x28] sm:$0xff]
        %v252 = vld [vmem:[#allocation2 + $0x30] sm:$0xff]
        %v253 = vld [vmem:[#allocation2 + $0x38] sm:$0xff]
        %v254 = vld [vmem:[#allocation2 + $0x40] sm:$0xff]
        %v255 = vld [vmem:[#allocation2 + $0x48] sm:$0xff]
        %v256 = vld [vmem:[#allocation2 + $0x50] sm:$0xff]
        %v257 = vld [vmem:[#allocation2 + $0x58] sm:$0xff]
        %v258 = vld [vmem:[#allocation2 + $0x60] sm:$0xff]
        %v259 = vld [vmem:[#allocation2 + $0x68] sm:$0xff]
        %v260 = vld [vmem:[#allocation2 + $0x70] sm:$0xff]
        %v261 = vld [vmem:[#allocation2 + $0x78] sm:$0xff]
        %v262 = vld [vmem:[#allocation3] sm:$0xff]
        %v263 = vld [vmem:[#allocation3 + $0x8] sm:$0xff]
        %v264 = vld [vmem:[#allocation3 + $0x10] sm:$0xff]
        %v265 = vld [vmem:[#allocation3 + $0x18] sm:$0xff]
        %v266 = vld [vmem:[#allocation3 + $0x20] sm:$0xff]
        %v267 = vld [vmem:[#allocation3 + $0x28] sm:$0xff]
        %v268 = vld [vmem:[#allocation3 + $0x30] sm:$0xff]
        %v269 = vld [vmem:[#allocation3 + $0x38] sm:$0xff]
        %v270 = vld [vmem:[%s198] sm:$0xff]
        %v271 = vld [vmem:[%s198 + $0x8] sm:$0xff]
        %v272 = vld [vmem:[%s198 + $0x10] sm:$0xff]
        %v273 = vld [vmem:[%s198 + $0x18] sm:$0xff]
        %v274 = vld [vmem:[%s198 + $0x20] sm:$0xff]
        %v275 = vld [vmem:[%s198 + $0x28] sm:$0xff]
        %v276 = vld [vmem:[%s198 + $0x30] sm:$0xff]
        %v277 = vld [vmem:[%s198 + $0x38] sm:$0xff]
        %v278 = vld [vmem:[%s198 + $0x40] sm:$0xff]
        %v279 = vld [vmem:[%s198 + $0x48] sm:$0xff]
        %v280 = vld [vmem:[%s198 + $0x50] sm:$0xff]
        %v281 = vld [vmem:[%s198 + $0x58] sm:$0xff]
        %v282 = vld [vmem:[%s198 + $0x60] sm:$0xff]
        %v283 = vld [vmem:[%s198 + $0x68] sm:$0xff]
        %v284 = vld [vmem:[%s198 + $0x70] sm:$0xff]
        %v285 = vld [vmem:[%s198 + $0x78] sm:$0xff]
        %v286 = vld [vmem:[%s198 + $0x80] sm:$0xff]
        %v287 = vld [vmem:[%s198 + $0x88] sm:$0xff]
        %v288 = vld [vmem:[%s198 + $0x90] sm:$0xff]
        %v289 = vld [vmem:[%s198 + $0x98] sm:$0xff]
        %v290 = vld [vmem:[%s198 + $0xa0] sm:$0xff]
        %v291 = vld [vmem:[%s198 + $0xa8] sm:$0xff]
        %v292 = vld [vmem:[%s198 + $0xb0] sm:$0xff]
        %v293 = vld [vmem:[%s198 + $0xb8] sm:$0xff]
        %v294 = vld [vmem:[%s198 + $0xc0] sm:$0xff]
        %v295 = vld [vmem:[%s198 + $0xc8] sm:$0xff]
        %v296 = vld [vmem:[%s198 + $0xd0] sm:$0xff]
        %v297 = vld [vmem:[%s198 + $0xd8] sm:$0xff]
        %v298 = vld [vmem:[%s198 + $0xe0] sm:$0xff]
        %v299 = vld [vmem:[%s198 + $0xe8] sm:$0xff]
        %v300 = vld [vmem:[%s198 + $0xf0] sm:$0xff]
        %v301 = vld [vmem:[%s198 + $0xf8] sm:$0xff]
        %v302 = vld [vmem:[%s198 + $0x100] sm:$0xff]
        %v303 = vld [vmem:[%s198 + $0x108] sm:$0xff]
        %v304 = vld [vmem:[%s198 + $0x110] sm:$0xff]
        %v305 = vld [vmem:[%s198 + $0x118] sm:$0xff]
        %v306 = vld [vmem:[%s198 + $0x120] sm:$0xff]
        %v307 = vld [vmem:[%s198 + $0x128] sm:$0xff]
        %v308 = vld [vmem:[%s198 + $0x130] sm:$0xff]
        %v309 = vld [vmem:[%s198 + $0x138] sm:$0xff]
        %v310 = vld [vmem:[%s198 + $0x140] sm:$0xff]
        %v311 = vld [vmem:[%s198 + $0x148] sm:$0xff]
        %v312 = vld [vmem:[%s198 + $0x150] sm:$0xff]
        %v313 = vld [vmem:[%s198 + $0x158] sm:$0xff]
        %v314 = vld [vmem:[%s198 + $0x160] sm:$0xff]
        %v315 = vld [vmem:[%s198 + $0x168] sm:$0xff]
        %v316 = vld [vmem:[%s198 + $0x170] sm:$0xff]
        %v317 = vld [vmem:[%s198 + $0x178] sm:$0xff]
        %v318 = vld [vmem:[%s198 + $0x180] sm:$0xff]
        %v319 = vld [vmem:[%s198 + $0x188] sm:$0xff]
        %v320 = vld [vmem:[%s198 + $0x190] sm:$0xff]
        %v321 = vld [vmem:[%s198 + $0x198] sm:$0xff]
        %v322 = vld [vmem:[%s198 + $0x1a0] sm:$0xff]
        %v323 = vld [vmem:[%s198 + $0x1a8] sm:$0xff]
        %v324 = vld [vmem:[%s198 + $0x1b0] sm:$0xff]
        %v325 = vld [vmem:[%s198 + $0x1b8] sm:$0xff]
        %v326 = vld [vmem:[%s198 + $0x1c0] sm:$0xff]
        %v327 = vld [vmem:[%s198 + $0x1c8] sm:$0xff]
        %v328 = vld [vmem:[%s198 + $0x1d0] sm:$0xff]
        %v329 = vld [vmem:[%s198 + $0x1d8] sm:$0xff]
        %v330 = vld [vmem:[%s198 + $0x1e0] sm:$0xff]
        %v331 = vld [vmem:[%s198 + $0x1e8] sm:$0xff]
        %v332 = vld [vmem:[%s198 + $0x1f0] sm:$0xff]
        %v333 = vld [vmem:[%s198 + $0x1f8] sm:$0xff]
        %v334 = vld [vmem:[%s198 + $0x200] sm:$0xff]
        %v335 = vld [vmem:[%s198 + $0x208] sm:$0xff]
        %v336 = vld [vmem:[%s198 + $0x210] sm:$0xff]
        %v337 = vld [vmem:[%s198 + $0x218] sm:$0xff]
        %v338 = vld [vmem:[%s198 + $0x220] sm:$0xff]
        %v339 = vld [vmem:[%s198 + $0x228] sm:$0xff]
        %v340 = vld [vmem:[%s198 + $0x230] sm:$0xff]
        %v341 = vld [vmem:[%s198 + $0x238] sm:$0xff]
        %v342 = vld [vmem:[%s198 + $0x240] sm:$0xff]
        %v343 = vld [vmem:[%s198 + $0x248] sm:$0xff]
        %v344 = vld [vmem:[%s198 + $0x250] sm:$0xff]
        %v345 = vld [vmem:[%s198 + $0x258] sm:$0xff]
        %v346 = vld [vmem:[%s198 + $0x260] sm:$0xff]
        %v347 = vld [vmem:[%s198 + $0x268] sm:$0xff]
        %v348 = vld [vmem:[%s198 + $0x270] sm:$0xff]
        %v349 = vld [vmem:[%s198 + $0x278] sm:$0xff]
        %v350 = vld [vmem:[%s198 + $0x280] sm:$0xff]
        %v351 = vld [vmem:[%s198 + $0x288] sm:$0xff]
        %v352 = vld [vmem:[%s198 + $0x290] sm:$0xff]
        %v353 = vld [vmem:[%s198 + $0x298] sm:$0xff]
        %v354 = vld [vmem:[%s198 + $0x2a0] sm:$0xff]
        %v355 = vld [vmem:[%s198 + $0x2a8] sm:$0xff]
        %v356 = vld [vmem:[%s198 + $0x2b0] sm:$0xff]
        %v357 = vld [vmem:[%s198 + $0x2b8] sm:$0xff]
        %v358 = vld [vmem:[%s198 + $0x2c0] sm:$0xff]
        %v359 = vld [vmem:[%s198 + $0x2c8] sm:$0xff]
        %v360 = vld [vmem:[%s198 + $0x2d0] sm:$0xff]
        %v361 = vld [vmem:[%s198 + $0x2d8] sm:$0xff]
        %v362 = vld [vmem:[%s198 + $0x2e0] sm:$0xff]
        %v363 = vld [vmem:[%s198 + $0x2e8] sm:$0xff]
        %v364 = vld [vmem:[%s198 + $0x2f0] sm:$0xff]
        %v365 = vld [vmem:[%s198 + $0x2f8] sm:$0xff]
        %v366 = vld [vmem:[%s198 + $0x300] sm:$0xff]
        %v367 = vld [vmem:[%s198 + $0x308] sm:$0xff]
        %v368 = vld [vmem:[%s198 + $0x310] sm:$0xff]
        %v369 = vld [vmem:[%s198 + $0x318] sm:$0xff]
        %v370 = vld [vmem:[%s198 + $0x320] sm:$0xff]
        %v371 = vld [vmem:[%s198 + $0x328] sm:$0xff]
        %v372 = vld [vmem:[%s198 + $0x330] sm:$0xff]
        %v373 = vld [vmem:[%s198 + $0x338] sm:$0xff]
        %v374 = vld [vmem:[%s198 + $0x340] sm:$0xff]
        %v375 = vld [vmem:[%s198 + $0x348] sm:$0xff]
        %v376 = vld [vmem:[%s198 + $0x350] sm:$0xff]
        %v377 = vld [vmem:[%s198 + $0x358] sm:$0xff]
        %v378 = vld [vmem:[%s198 + $0x360] sm:$0xff]
        %v379 = vld [vmem:[%s198 + $0x368] sm:$0xff]
        %v380 = vld [vmem:[%s198 + $0x370] sm:$0xff]
        %v381 = vld [vmem:[%s198 + $0x378] sm:$0xff]
        %v382 = vld [vmem:[%s198 + $0x380] sm:$0xff]
        %v383 = vld [vmem:[%s198 + $0x388] sm:$0xff]
        %v384 = vld [vmem:[%s198 + $0x390] sm:$0xff]
        %v385 = vld [vmem:[%s198 + $0x398] sm:$0xff]
        %v386 = vld [vmem:[%s198 + $0x3a0] sm:$0xff]
        %v387 = vld [vmem:[%s198 + $0x3a8] sm:$0xff]
        %v388 = vld [vmem:[%s198 + $0x3b0] sm:$0xff]
        %v389 = vld [vmem:[%s198 + $0x3b8] sm:$0xff]
        %v390 = vld [vmem:[%s198 + $0x3c0] sm:$0xff]
        %v391 = vld [vmem:[%s198 + $0x3c8] sm:$0xff]
        %v392 = vld [vmem:[%s198 + $0x3d0] sm:$0xff]
        %v393 = vld [vmem:[%s198 + $0x3d8] sm:$0xff]
        %v394 = vld [vmem:[%s198 + $0x3e0] sm:$0xff]
        %v395 = vld [vmem:[%s198 + $0x3e8] sm:$0xff]
        %v396 = vld [vmem:[%s198 + $0x3f0] sm:$0xff]
        %v397 = vld [vmem:[%s198 + $0x3f8] sm:$0xff]
        %v406 = vunpack.c.l.b16 %v262
        %v407 = vunpack.c.h.b16 %v262
        %v408 = vunpack.c.l.b16 %v263
        %v409 = vunpack.c.h.b16 %v263
        %v410 = vunpack.c.l.b16 %v264
        %v411 = vunpack.c.h.b16 %v264
        %v412 = vunpack.c.l.b16 %v265
        %v413 = vunpack.c.h.b16 %v265
        %v414 = vunpack.c.l.b16 %v266
        %v415 = vunpack.c.h.b16 %v266
        %v416 = vunpack.c.l.b16 %v267
        %v417 = vunpack.c.h.b16 %v267
        %v418 = vunpack.c.l.b16 %v268
        %v419 = vunpack.c.h.b16 %v268
        %v420 = vunpack.c.l.b16 %v269
        %v421 = vunpack.c.h.b16 %v269
        %v422 = vpack.c.b16 %v410, %v406
        %v423 = vpack.c.b16 %v411, %v407
        %v424 = vpack.c.b16 %v412, %v408
        %v425 = vpack.c.b16 %v413, %v409
        %v426 = vpack.c.b16 %v418, %v414
        %v427 = vpack.c.b16 %v419, %v415
        %v428 = vpack.c.b16 %v420, %v416
        %v429 = vpack.c.b16 %v421, %v417
        %v566 = vunpack.c.l.b16 %v270
        %v567 = vunpack.c.h.b16 %v270
        %v568 = vunpack.c.l.b16 %v271
        %v569 = vunpack.c.h.b16 %v271
        %v570 = vunpack.c.l.b16 %v272
        %v571 = vunpack.c.h.b16 %v272
        %v572 = vunpack.c.l.b16 %v273
        %v573 = vunpack.c.h.b16 %v273
        %v574 = vunpack.c.l.b16 %v274
        %v575 = vunpack.c.h.b16 %v274
        %v576 = vunpack.c.l.b16 %v275
        %v577 = vunpack.c.h.b16 %v275
        %v578 = vunpack.c.l.b16 %v276
        %v579 = vunpack.c.h.b16 %v276
        %v580 = vunpack.c.l.b16 %v277
        %v581 = vunpack.c.h.b16 %v277
        %v582 = vunpack.c.l.b16 %v278
        %v583 = vunpack.c.h.b16 %v278
        %v584 = vunpack.c.l.b16 %v279
        %v585 = vunpack.c.h.b16 %v279
        %v586 = vunpack.c.l.b16 %v280
        %v587 = vunpack.c.h.b16 %v280
        %v588 = vunpack.c.l.b16 %v281
        %v589 = vunpack.c.h.b16 %v281
        %v590 = vunpack.c.l.b16 %v282
        %v591 = vunpack.c.h.b16 %v282
        %v592 = vunpack.c.l.b16 %v283
        %v593 = vunpack.c.h.b16 %v283
        %v594 = vunpack.c.l.b16 %v284
        %v595 = vunpack.c.h.b16 %v284
        %v596 = vunpack.c.l.b16 %v285
        %v597 = vunpack.c.h.b16 %v285
        %v598 = vunpack.c.l.b16 %v286
        %v599 = vunpack.c.h.b16 %v286
        %v600 = vunpack.c.l.b16 %v287
        %v601 = vunpack.c.h.b16 %v287
        %v602 = vunpack.c.l.b16 %v288
        %v603 = vunpack.c.h.b16 %v288
        %v604 = vunpack.c.l.b16 %v289
        %v605 = vunpack.c.h.b16 %v289
        %v606 = vunpack.c.l.b16 %v290
        %v607 = vunpack.c.h.b16 %v290
        %v608 = vunpack.c.l.b16 %v291
        %v609 = vunpack.c.h.b16 %v291
        %v610 = vunpack.c.l.b16 %v292
        %v611 = vunpack.c.h.b16 %v292
        %v612 = vunpack.c.l.b16 %v293
        %v613 = vunpack.c.h.b16 %v293
        %v614 = vunpack.c.l.b16 %v294
        %v615 = vunpack.c.h.b16 %v294
        %v616 = vunpack.c.l.b16 %v295
        %v617 = vunpack.c.h.b16 %v295
        %v618 = vunpack.c.l.b16 %v296
        %v619 = vunpack.c.h.b16 %v296
        %v620 = vunpack.c.l.b16 %v297
        %v621 = vunpack.c.h.b16 %v297
        %v622 = vunpack.c.l.b16 %v298
        %v623 = vunpack.c.h.b16 %v298
        %v624 = vunpack.c.l.b16 %v299
        %v625 = vunpack.c.h.b16 %v299
        %v626 = vunpack.c.l.b16 %v300
        %v627 = vunpack.c.h.b16 %v300
        %v628 = vunpack.c.l.b16 %v301
        %v629 = vunpack.c.h.b16 %v301
        %v630 = vunpack.c.l.b16 %v302
        %v631 = vunpack.c.h.b16 %v302
        %v632 = vunpack.c.l.b16 %v303
        %v633 = vunpack.c.h.b16 %v303
        %v634 = vunpack.c.l.b16 %v304
        %v635 = vunpack.c.h.b16 %v304
        %v636 = vunpack.c.l.b16 %v305
        %v637 = vunpack.c.h.b16 %v305
        %v638 = vunpack.c.l.b16 %v306
        %v639 = vunpack.c.h.b16 %v306
        %v640 = vunpack.c.l.b16 %v307
        %v641 = vunpack.c.h.b16 %v307
        %v642 = vunpack.c.l.b16 %v308
        %v643 = vunpack.c.h.b16 %v308
        %v644 = vunpack.c.l.b16 %v309
        %v645 = vunpack.c.h.b16 %v309
        %v646 = vunpack.c.l.b16 %v310
        %v647 = vunpack.c.h.b16 %v310
        %v648 = vunpack.c.l.b16 %v311
        %v649 = vunpack.c.h.b16 %v311
        %v650 = vunpack.c.l.b16 %v312
        %v651 = vunpack.c.h.b16 %v312
        %v652 = vunpack.c.l.b16 %v313
        %v653 = vunpack.c.h.b16 %v313
        %v654 = vunpack.c.l.b16 %v314
        %v655 = vunpack.c.h.b16 %v314
        %v656 = vunpack.c.l.b16 %v315
        %v657 = vunpack.c.h.b16 %v315
        %v658 = vunpack.c.l.b16 %v316
        %v659 = vunpack.c.h.b16 %v316
        %v660 = vunpack.c.l.b16 %v317
        %v661 = vunpack.c.h.b16 %v317
        %v662 = vunpack.c.l.b16 %v318
        %v663 = vunpack.c.h.b16 %v318
        %v664 = vunpack.c.l.b16 %v319
        %v665 = vunpack.c.h.b16 %v319
        %v666 = vunpack.c.l.b16 %v320
        %v667 = vunpack.c.h.b16 %v320
        %v668 = vunpack.c.l.b16 %v321
        %v669 = vunpack.c.h.b16 %v321
        %v670 = vunpack.c.l.b16 %v322
        %v671 = vunpack.c.h.b16 %v322
        %v672 = vunpack.c.l.b16 %v323
        %v673 = vunpack.c.h.b16 %v323
        %v674 = vunpack.c.l.b16 %v324
        %v675 = vunpack.c.h.b16 %v324
        %v676 = vunpack.c.l.b16 %v325
        %v677 = vunpack.c.h.b16 %v325
        %v678 = vunpack.c.l.b16 %v326
        %v679 = vunpack.c.h.b16 %v326
        %v680 = vunpack.c.l.b16 %v327
        %v681 = vunpack.c.h.b16 %v327
        %v682 = vunpack.c.l.b16 %v328
        %v683 = vunpack.c.h.b16 %v328
        %v684 = vunpack.c.l.b16 %v329
        %v685 = vunpack.c.h.b16 %v329
        %v686 = vunpack.c.l.b16 %v330
        %v687 = vunpack.c.h.b16 %v330
        %v688 = vunpack.c.l.b16 %v331
        %v689 = vunpack.c.h.b16 %v331
        %v690 = vunpack.c.l.b16 %v332
        %v691 = vunpack.c.h.b16 %v332
        %v692 = vunpack.c.l.b16 %v333
        %v693 = vunpack.c.h.b16 %v333
        %v694 = vunpack.c.l.b16 %v334
        %v695 = vunpack.c.h.b16 %v334
        %v696 = vunpack.c.l.b16 %v335
        %v697 = vunpack.c.h.b16 %v335
        %v698 = vunpack.c.l.b16 %v336
        %v699 = vunpack.c.h.b16 %v336
        %v700 = vunpack.c.l.b16 %v337
        %v701 = vunpack.c.h.b16 %v337
        %v702 = vunpack.c.l.b16 %v338
        %v703 = vunpack.c.h.b16 %v338
        %v704 = vunpack.c.l.b16 %v339
        %v705 = vunpack.c.h.b16 %v339
        %v706 = vunpack.c.l.b16 %v340
        %v707 = vunpack.c.h.b16 %v340
        %v708 = vunpack.c.l.b16 %v341
        %v709 = vunpack.c.h.b16 %v341
        %v710 = vunpack.c.l.b16 %v342
        %v711 = vunpack.c.h.b16 %v342
        %v712 = vunpack.c.l.b16 %v343
        %v713 = vunpack.c.h.b16 %v343
        %v714 = vunpack.c.l.b16 %v344
        %v715 = vunpack.c.h.b16 %v344
        %v716 = vunpack.c.l.b16 %v345
        %v717 = vunpack.c.h.b16 %v345
        %v718 = vunpack.c.l.b16 %v346
        %v719 = vunpack.c.h.b16 %v346
        %v720 = vunpack.c.l.b16 %v347
        %v721 = vunpack.c.h.b16 %v347
        %v722 = vunpack.c.l.b16 %v348
        %v723 = vunpack.c.h.b16 %v348
        %v724 = vunpack.c.l.b16 %v349
        %v725 = vunpack.c.h.b16 %v349
        %v726 = vunpack.c.l.b16 %v350
        %v727 = vunpack.c.h.b16 %v350
        %v728 = vunpack.c.l.b16 %v351
        %v729 = vunpack.c.h.b16 %v351
        %v730 = vunpack.c.l.b16 %v352
        %v731 = vunpack.c.h.b16 %v352
        %v732 = vunpack.c.l.b16 %v353
        %v733 = vunpack.c.h.b16 %v353
        %v734 = vunpack.c.l.b16 %v354
        %v735 = vunpack.c.h.b16 %v354
        %v736 = vunpack.c.l.b16 %v355
        %v737 = vunpack.c.h.b16 %v355
        %v738 = vunpack.c.l.b16 %v356
        %v739 = vunpack.c.h.b16 %v356
        %v740 = vunpack.c.l.b16 %v357
        %v741 = vunpack.c.h.b16 %v357
        %v742 = vunpack.c.l.b16 %v358
        %v743 = vunpack.c.h.b16 %v358
        %v744 = vunpack.c.l.b16 %v359
        %v745 = vunpack.c.h.b16 %v359
        %v746 = vunpack.c.l.b16 %v360
        %v747 = vunpack.c.h.b16 %v360
        %v748 = vunpack.c.l.b16 %v361
        %v749 = vunpack.c.h.b16 %v361
        %v750 = vunpack.c.l.b16 %v362
        %v751 = vunpack.c.h.b16 %v362
        %v752 = vunpack.c.l.b16 %v363
        %v753 = vunpack.c.h.b16 %v363
        %v754 = vunpack.c.l.b16 %v364
        %v755 = vunpack.c.h.b16 %v364
        %v756 = vunpack.c.l.b16 %v365
        %v757 = vunpack.c.h.b16 %v365
        %v758 = vunpack.c.l.b16 %v366
        %v759 = vunpack.c.h.b16 %v366
        %v760 = vunpack.c.l.b16 %v367
        %v761 = vunpack.c.h.b16 %v367
        %v762 = vunpack.c.l.b16 %v368
        %v763 = vunpack.c.h.b16 %v368
        %v764 = vunpack.c.l.b16 %v369
        %v765 = vunpack.c.h.b16 %v369
        %v766 = vunpack.c.l.b16 %v370
        %v767 = vunpack.c.h.b16 %v370
        %v768 = vunpack.c.l.b16 %v371
        %v769 = vunpack.c.h.b16 %v371
        %v770 = vunpack.c.l.b16 %v372
        %v771 = vunpack.c.h.b16 %v372
        %v772 = vunpack.c.l.b16 %v373
        %v773 = vunpack.c.h.b16 %v373
        %v774 = vunpack.c.l.b16 %v374
        %v775 = vunpack.c.h.b16 %v374
        %v776 = vunpack.c.l.b16 %v375
        %v777 = vunpack.c.h.b16 %v375
        %v778 = vunpack.c.l.b16 %v376
        %v779 = vunpack.c.h.b16 %v376
        %v780 = vunpack.c.l.b16 %v377
        %v781 = vunpack.c.h.b16 %v377
        %v782 = vunpack.c.l.b16 %v378
        %v783 = vunpack.c.h.b16 %v378
        %v784 = vunpack.c.l.b16 %v379
        %v785 = vunpack.c.h.b16 %v379
        %v786 = vunpack.c.l.b16 %v380
        %v787 = vunpack.c.h.b16 %v380
        %v788 = vunpack.c.l.b16 %v381
        %v789 = vunpack.c.h.b16 %v381
        %v790 = vunpack.c.l.b16 %v382
        %v791 = vunpack.c.h.b16 %v382
        %v792 = vunpack.c.l.b16 %v383
        %v793 = vunpack.c.h.b16 %v383
        %v794 = vunpack.c.l.b16 %v384
        %v795 = vunpack.c.h.b16 %v384
        %v796 = vunpack.c.l.b16 %v385
        %v797 = vunpack.c.h.b16 %v385
        %v798 = vunpack.c.l.b16 %v386
        %v799 = vunpack.c.h.b16 %v386
        %v800 = vunpack.c.l.b16 %v387
        %v801 = vunpack.c.h.b16 %v387
        %v802 = vunpack.c.l.b16 %v388
        %v803 = vunpack.c.h.b16 %v388
        %v804 = vunpack.c.l.b16 %v389
        %v805 = vunpack.c.h.b16 %v389
        %v806 = vunpack.c.l.b16 %v390
        %v807 = vunpack.c.h.b16 %v390
        %v808 = vunpack.c.l.b16 %v391
        %v809 = vunpack.c.h.b16 %v391
        %v810 = vunpack.c.l.b16 %v392
        %v811 = vunpack.c.h.b16 %v392
        %v812 = vunpack.c.l.b16 %v393
        %v813 = vunpack.c.h.b16 %v393
        %v814 = vunpack.c.l.b16 %v394
        %v815 = vunpack.c.h.b16 %v394
        %v816 = vunpack.c.l.b16 %v395
        %v817 = vunpack.c.h.b16 %v395
        %v818 = vunpack.c.l.b16 %v396
        %v819 = vunpack.c.h.b16 %v396
        %v820 = vunpack.c.l.b16 %v397
        %v821 = vunpack.c.h.b16 %v397
        %v822 = vpack.c.b16 %v570, %v566
        %v823 = vpack.c.b16 %v571, %v567
        %v824 = vpack.c.b16 %v572, %v568
        %v825 = vpack.c.b16 %v573, %v569
        %v826 = vpack.c.b16 %v578, %v574
        %v827 = vpack.c.b16 %v579, %v575
        %v828 = vpack.c.b16 %v580, %v576
        %v829 = vpack.c.b16 %v581, %v577
        %v830 = vpack.c.b16 %v586, %v582
        %v831 = vpack.c.b16 %v587, %v583
        %v832 = vpack.c.b16 %v588, %v584
        %v833 = vpack.c.b16 %v589, %v585
        %v834 = vpack.c.b16 %v594, %v590
        %v835 = vpack.c.b16 %v595, %v591
        %v836 = vpack.c.b16 %v596, %v592
        %v837 = vpack.c.b16 %v597, %v593
        %v838 = vpack.c.b16 %v602, %v598
        %v839 = vpack.c.b16 %v603, %v599
        %v840 = vpack.c.b16 %v604, %v600
        %v841 = vpack.c.b16 %v605, %v601
        %v842 = vpack.c.b16 %v610, %v606
        %v843 = vpack.c.b16 %v611, %v607
        %v844 = vpack.c.b16 %v612, %v608
        %v845 = vpack.c.b16 %v613, %v609
        %v846 = vpack.c.b16 %v618, %v614
        %v847 = vpack.c.b16 %v619, %v615
        %v848 = vpack.c.b16 %v620, %v616
        %v849 = vpack.c.b16 %v621, %v617
        %v850 = vpack.c.b16 %v626, %v622
        %v851 = vpack.c.b16 %v627, %v623
        %v852 = vpack.c.b16 %v628, %v624
        %v853 = vpack.c.b16 %v629, %v625
        %v854 = vpack.c.b16 %v634, %v630
        %v855 = vpack.c.b16 %v635, %v631
        %v856 = vpack.c.b16 %v636, %v632
        %v857 = vpack.c.b16 %v637, %v633
        %v858 = vpack.c.b16 %v642, %v638
        %v859 = vpack.c.b16 %v643, %v639
        %v860 = vpack.c.b16 %v644, %v640
        %v861 = vpack.c.b16 %v645, %v641
        %v862 = vpack.c.b16 %v650, %v646
        %v863 = vpack.c.b16 %v651, %v647
        %v864 = vpack.c.b16 %v652, %v648
        %v865 = vpack.c.b16 %v653, %v649
        %v866 = vpack.c.b16 %v658, %v654
        %v867 = vpack.c.b16 %v659, %v655
        %v868 = vpack.c.b16 %v660, %v656
        %v869 = vpack.c.b16 %v661, %v657
        %v870 = vpack.c.b16 %v666, %v662
        %v871 = vpack.c.b16 %v667, %v663
        %v872 = vpack.c.b16 %v668, %v664
        %v873 = vpack.c.b16 %v669, %v665
        %v874 = vpack.c.b16 %v674, %v670
        %v875 = vpack.c.b16 %v675, %v671
        %v876 = vpack.c.b16 %v676, %v672
        %v877 = vpack.c.b16 %v677, %v673
        %v878 = vpack.c.b16 %v682, %v678
        %v879 = vpack.c.b16 %v683, %v679
        %v880 = vpack.c.b16 %v684, %v680
        %v881 = vpack.c.b16 %v685, %v681
        %v882 = vpack.c.b16 %v690, %v686
        %v883 = vpack.c.b16 %v691, %v687
        %v884 = vpack.c.b16 %v692, %v688
        %v885 = vpack.c.b16 %v693, %v689
        %v886 = vpack.c.b16 %v698, %v694
        %v887 = vpack.c.b16 %v699, %v695
        %v888 = vpack.c.b16 %v700, %v696
        %v889 = vpack.c.b16 %v701, %v697
        %v890 = vpack.c.b16 %v706, %v702
        %v891 = vpack.c.b16 %v707, %v703
        %v892 = vpack.c.b16 %v708, %v704
        %v893 = vpack.c.b16 %v709, %v705
        %v894 = vpack.c.b16 %v714, %v710
        %v895 = vpack.c.b16 %v715, %v711
        %v896 = vpack.c.b16 %v716, %v712
        %v897 = vpack.c.b16 %v717, %v713
        %v898 = vpack.c.b16 %v722, %v718
        %v899 = vpack.c.b16 %v723, %v719
        %v900 = vpack.c.b16 %v724, %v720
        %v901 = vpack.c.b16 %v725, %v721
        %v902 = vpack.c.b16 %v730, %v726
        %v903 = vpack.c.b16 %v731, %v727
        %v904 = vpack.c.b16 %v732, %v728
        %v905 = vpack.c.b16 %v733, %v729
        %v906 = vpack.c.b16 %v738, %v734
        %v907 = vpack.c.b16 %v739, %v735
        %v908 = vpack.c.b16 %v740, %v736
        %v909 = vpack.c.b16 %v741, %v737
        %v910 = vpack.c.b16 %v746, %v742
        %v911 = vpack.c.b16 %v747, %v743
        %v912 = vpack.c.b16 %v748, %v744
        %v913 = vpack.c.b16 %v749, %v745
        %v914 = vpack.c.b16 %v754, %v750
        %v915 = vpack.c.b16 %v755, %v751
        %v916 = vpack.c.b16 %v756, %v752
        %v917 = vpack.c.b16 %v757, %v753
        %v918 = vpack.c.b16 %v762, %v758
        %v919 = vpack.c.b16 %v763, %v759
        %v920 = vpack.c.b16 %v764, %v760
        %v921 = vpack.c.b16 %v765, %v761
        %v922 = vpack.c.b16 %v770, %v766
        %v923 = vpack.c.b16 %v771, %v767
        %v924 = vpack.c.b16 %v772, %v768
        %v925 = vpack.c.b16 %v773, %v769
        %v926 = vpack.c.b16 %v778, %v774
        %v927 = vpack.c.b16 %v779, %v775
        %v928 = vpack.c.b16 %v780, %v776
        %v929 = vpack.c.b16 %v781, %v777
        %v930 = vpack.c.b16 %v786, %v782
        %v931 = vpack.c.b16 %v787, %v783
        %v932 = vpack.c.b16 %v788, %v784
        %v933 = vpack.c.b16 %v789, %v785
        %v934 = vpack.c.b16 %v794, %v790
        %v935 = vpack.c.b16 %v795, %v791
        %v936 = vpack.c.b16 %v796, %v792
        %v937 = vpack.c.b16 %v797, %v793
        %v938 = vpack.c.b16 %v802, %v798
        %v939 = vpack.c.b16 %v803, %v799
        %v940 = vpack.c.b16 %v804, %v800
        %v941 = vpack.c.b16 %v805, %v801
        %v942 = vpack.c.b16 %v810, %v806
        %v943 = vpack.c.b16 %v811, %v807
        %v944 = vpack.c.b16 %v812, %v808
        %v945 = vpack.c.b16 %v813, %v809
        %v946 = vpack.c.b16 %v818, %v814
        %v947 = vpack.c.b16 %v819, %v815
        %v948 = vpack.c.b16 %v820, %v816
        %v949 = vpack.c.b16 %v821, %v817
        %1078 = vmatpush.bf16.msra.mxu0 %v850
        %1079 = vmatpush.bf16.msra.mxu0 %v846
        %1080 = vmatpush.bf16.msra.mxu0 %v842
        %1081 = vmatpush.bf16.msra.mxu0 %v838
        %1082 = vmatpush.bf16.msra.mxu0 %v834
        %1083 = vmatpush.bf16.msra.mxu0 %v830
        %1084 = vmatpush.bf16.msra.mxu0 %v826
        %1085 = vmatpush.bf16.msra.mxu0 %v822
        %1086 = vmatmul.bf16.gmra.mxu0 %v422
        %v1087 = vpop.f32.mrf.mxu0
        %v1088 = vadd.f32 0.0, %v1087
        %v1089 = vpop.f32.mrf.mxu0
        %v1090 = vadd.f32 0.0, %v1089
        %1091 = vmatmul.bf16.gmra.mxu0 %v426
        %v1092 = vpop.f32.mrf.mxu0
        %v1093 = vadd.f32 0.0, %v1092
        %v1094 = vpop.f32.mrf.mxu0
        %v1095 = vadd.f32 0.0, %v1094
        %1096 = vdwg.mxu0
        %1097 = vmatpush.bf16.msra.mxu0 %v882
        %1098 = vmatpush.bf16.msra.mxu0 %v878
        %1099 = vmatpush.bf16.msra.mxu0 %v874
        %1100 = vmatpush.bf16.msra.mxu0 %v870
        %1101 = vmatpush.bf16.msra.mxu0 %v866
        %1102 = vmatpush.bf16.msra.mxu0 %v862
        %1103 = vmatpush.bf16.msra.mxu0 %v858
        %1104 = vmatpush.bf16.msra.mxu0 %v854
        %1105 = vmatmul.bf16.gmra.mxu0 %v423
        %v1106 = vpop.f32.mrf.mxu0
        %v1107 = vadd.f32 %v1088, %v1106
        %v1108 = vpop.f32.mrf.mxu0
        %v1109 = vadd.f32 %v1090, %v1108
        %1110 = vmatmul.bf16.gmra.mxu0 %v427
        %v1111 = vpop.f32.mrf.mxu0
        %v1112 = vadd.f32 %v1093, %v1111
        %v1113 = vpop.f32.mrf.mxu0
        %v1114 = vadd.f32 %v1095, %v1113
        %1115 = vdwg.mxu0
        %1116 = vmatpush.bf16.msra.mxu0 %v914
        %1117 = vmatpush.bf16.msra.mxu0 %v910
        %1118 = vmatpush.bf16.msra.mxu0 %v906
        %1119 = vmatpush.bf16.msra.mxu0 %v902
        %1120 = vmatpush.bf16.msra.mxu0 %v898
        %1121 = vmatpush.bf16.msra.mxu0 %v894
        %1122 = vmatpush.bf16.msra.mxu0 %v890
        %1123 = vmatpush.bf16.msra.mxu0 %v886
        %1124 = vmatmul.bf16.gmra.mxu0 %v424
        %v1125 = vpop.f32.mrf.mxu0
        %v1126 = vadd.f32 %v1107, %v1125
        %v1127 = vpop.f32.mrf.mxu0
        %v1128 = vadd.f32 %v1109, %v1127
        %1129 = vmatmul.bf16.gmra.mxu0 %v428
        %v1130 = vpop.f32.mrf.mxu0
        %v1131 = vadd.f32 %v1112, %v1130
        %v1132 = vpop.f32.mrf.mxu0
        %v1133 = vadd.f32 %v1114, %v1132
        %1134 = vdwg.mxu0
        %1135 = vmatpush.bf16.msra.mxu0 %v946
        %1136 = vmatpush.bf16.msra.mxu0 %v942
        %1137 = vmatpush.bf16.msra.mxu0 %v938
        %1138 = vmatpush.bf16.msra.mxu0 %v934
        %1139 = vmatpush.bf16.msra.mxu0 %v930
        %1140 = vmatpush.bf16.msra.mxu0 %v926
        %1141 = vmatpush.bf16.msra.mxu0 %v922
        %1142 = vmatpush.bf16.msra.mxu0 %v918
        %1143 = vmatmul.bf16.gmra.mxu0 %v425
        %v1144 = vpop.f32.mrf.mxu0
        %v1145 = vadd.f32 %v1126, %v1144
        %v1146 = vpop.f32.mrf.mxu0
        %v1147 = vadd.f32 %v1128, %v1146
        %1148 = vmatmul.bf16.gmra.mxu0 %v429
        %v1149 = vpop.f32.mrf.mxu0
        %v1150 = vadd.f32 %v1131, %v1149
        %v1151 = vpop.f32.mrf.mxu0
        %v1152 = vadd.f32 %v1133, %v1151
        %1153 = vdwg.mxu0
        %1154 = vmatpush.bf16.msra.mxu0 %v851
        %1155 = vmatpush.bf16.msra.mxu0 %v847
        %1156 = vmatpush.bf16.msra.mxu0 %v843
        %1157 = vmatpush.bf16.msra.mxu0 %v839
        %1158 = vmatpush.bf16.msra.mxu0 %v835
        %1159 = vmatpush.bf16.msra.mxu0 %v831
        %1160 = vmatpush.bf16.msra.mxu0 %v827
        %1161 = vmatpush.bf16.msra.mxu0 %v823
        %1162 = vmatmul.bf16.gmra.mxu0 %v422
        %v1163 = vpop.f32.mrf.mxu0
        %v1164 = vadd.f32 0.0, %v1163
        %v1165 = vpop.f32.mrf.mxu0
        %v1166 = vadd.f32 0.0, %v1165
        %1167 = vmatmul.bf16.gmra.mxu0 %v426
        %v1168 = vpop.f32.mrf.mxu0
        %v1169 = vadd.f32 0.0, %v1168
        %v1170 = vpop.f32.mrf.mxu0
        %v1171 = vadd.f32 0.0, %v1170
        %1172 = vdwg.mxu0
        %1173 = vmatpush.bf16.msra.mxu0 %v883
        %1174 = vmatpush.bf16.msra.mxu0 %v879
        %1175 = vmatpush.bf16.msra.mxu0 %v875
        %1176 = vmatpush.bf16.msra.mxu0 %v871
        %1177 = vmatpush.bf16.msra.mxu0 %v867
        %1178 = vmatpush.bf16.msra.mxu0 %v863
        %1179 = vmatpush.bf16.msra.mxu0 %v859
        %1180 = vmatpush.bf16.msra.mxu0 %v855
        %1181 = vmatmul.bf16.gmra.mxu0 %v423
        %v1182 = vpop.f32.mrf.mxu0
        %v1183 = vadd.f32 %v1164, %v1182
        %v1184 = vpop.f32.mrf.mxu0
        %v1185 = vadd.f32 %v1166, %v1184
        %1186 = vmatmul.bf16.gmra.mxu0 %v427
        %v1187 = vpop.f32.mrf.mxu0
        %v1188 = vadd.f32 %v1169, %v1187
        %v1189 = vpop.f32.mrf.mxu0
        %v1190 = vadd.f32 %v1171, %v1189
        %1191 = vdwg.mxu0
        %1192 = vmatpush.bf16.msra.mxu0 %v915
        %1193 = vmatpush.bf16.msra.mxu0 %v911
        %1194 = vmatpush.bf16.msra.mxu0 %v907
        %1195 = vmatpush.bf16.msra.mxu0 %v903
        %1196 = vmatpush.bf16.msra.mxu0 %v899
        %1197 = vmatpush.bf16.msra.mxu0 %v895
        %1198 = vmatpush.bf16.msra.mxu0 %v891
        %1199 = vmatpush.bf16.msra.mxu0 %v887
        %1200 = vmatmul.bf16.gmra.mxu0 %v424
        %v1201 = vpop.f32.mrf.mxu0
        %v1202 = vadd.f32 %v1183, %v1201
        %v1203 = vpop.f32.mrf.mxu0
        %v1204 = vadd.f32 %v1185, %v1203
        %1205 = vmatmul.bf16.gmra.mxu0 %v428
        %v1206 = vpop.f32.mrf.mxu0
        %v1207 = vadd.f32 %v1188, %v1206
        %v1208 = vpop.f32.mrf.mxu0
        %v1209 = vadd.f32 %v1190, %v1208
        %1210 = vdwg.mxu0
        %1211 = vmatpush.bf16.msra.mxu0 %v947
        %1212 = vmatpush.bf16.msra.mxu0 %v943
        %1213 = vmatpush.bf16.msra.mxu0 %v939
        %1214 = vmatpush.bf16.msra.mxu0 %v935
        %1215 = vmatpush.bf16.msra.mxu0 %v931
        %1216 = vmatpush.bf16.msra.mxu0 %v927
        %1217 = vmatpush.bf16.msra.mxu0 %v923
        %1218 = vmatpush.bf16.msra.mxu0 %v919
        %1219 = vmatmul.bf16.gmra.mxu0 %v425
        %v1220 = vpop.f32.mrf.mxu0
        %v1221 = vadd.f32 %v1202, %v1220
        %v1222 = vpop.f32.mrf.mxu0
        %v1223 = vadd.f32 %v1204, %v1222
        %1224 = vmatmul.bf16.gmra.mxu0 %v429
        %v1225 = vpop.f32.mrf.mxu0
        %v1226 = vadd.f32 %v1207, %v1225
        %v1227 = vpop.f32.mrf.mxu0
        %v1228 = vadd.f32 %v1209, %v1227
        %1229 = vdwg.mxu0
        %1230 = vmatpush.bf16.msra.mxu0 %v852
        %1231 = vmatpush.bf16.msra.mxu0 %v848
        %1232 = vmatpush.bf16.msra.mxu0 %v844
        %1233 = vmatpush.bf16.msra.mxu0 %v840
        %1234 = vmatpush.bf16.msra.mxu0 %v836
        %1235 = vmatpush.bf16.msra.mxu0 %v832
        %1236 = vmatpush.bf16.msra.mxu0 %v828
        %1237 = vmatpush.bf16.msra.mxu0 %v824
        %1238 = vmatmul.bf16.gmra.mxu0 %v422
        %v1239 = vpop.f32.mrf.mxu0
        %v1240 = vadd.f32 0.0, %v1239
        %v1241 = vpop.f32.mrf.mxu0
        %v1242 = vadd.f32 0.0, %v1241
        %1243 = vmatmul.bf16.gmra.mxu0 %v426
        %v1244 = vpop.f32.mrf.mxu0
        %v1245 = vadd.f32 0.0, %v1244
        %v1246 = vpop.f32.mrf.mxu0
        %v1247 = vadd.f32 0.0, %v1246
        %1248 = vdwg.mxu0
        %1249 = vmatpush.bf16.msra.mxu0 %v884
        %1250 = vmatpush.bf16.msra.mxu0 %v880
        %1251 = vmatpush.bf16.msra.mxu0 %v876
        %1252 = vmatpush.bf16.msra.mxu0 %v872
        %1253 = vmatpush.bf16.msra.mxu0 %v868
        %1254 = vmatpush.bf16.msra.mxu0 %v864
        %1255 = vmatpush.bf16.msra.mxu0 %v860
        %1256 = vmatpush.bf16.msra.mxu0 %v856
        %1257 = vmatmul.bf16.gmra.mxu0 %v423
        %v1258 = vpop.f32.mrf.mxu0
        %v1259 = vadd.f32 %v1240, %v1258
        %v1260 = vpop.f32.mrf.mxu0
        %v1261 = vadd.f32 %v1242, %v1260
        %1262 = vmatmul.bf16.gmra.mxu0 %v427
        %v1263 = vpop.f32.mrf.mxu0
        %v1264 = vadd.f32 %v1245, %v1263
        %v1265 = vpop.f32.mrf.mxu0
        %v1266 = vadd.f32 %v1247, %v1265
        %1267 = vdwg.mxu0
        %1268 = vmatpush.bf16.msra.mxu0 %v916
        %1269 = vmatpush.bf16.msra.mxu0 %v912
        %1270 = vmatpush.bf16.msra.mxu0 %v908
        %1271 = vmatpush.bf16.msra.mxu0 %v904
        %1272 = vmatpush.bf16.msra.mxu0 %v900
        %1273 = vmatpush.bf16.msra.mxu0 %v896
        %1274 = vmatpush.bf16.msra.mxu0 %v892
        %1275 = vmatpush.bf16.msra.mxu0 %v888
        %1276 = vmatmul.bf16.gmra.mxu0 %v424
        %v1277 = vpop.f32.mrf.mxu0
        %v1278 = vadd.f32 %v1259, %v1277
        %v1279 = vpop.f32.mrf.mxu0
        %v1280 = vadd.f32 %v1261, %v1279
        %1281 = vmatmul.bf16.gmra.mxu0 %v428
        %v1282 = vpop.f32.mrf.mxu0
        %v1283 = vadd.f32 %v1264, %v1282
        %v1284 = vpop.f32.mrf.mxu0
        %v1285 = vadd.f32 %v1266, %v1284
        %1286 = vdwg.mxu0
        %1287 = vmatpush.bf16.msra.mxu0 %v948
        %1288 = vmatpush.bf16.msra.mxu0 %v944
        %1289 = vmatpush.bf16.msra.mxu0 %v940
        %1290 = vmatpush.bf16.msra.mxu0 %v936
        %1291 = vmatpush.bf16.msra.mxu0 %v932
        %1292 = vmatpush.bf16.msra.mxu0 %v928
        %1293 = vmatpush.bf16.msra.mxu0 %v924
        %1294 = vmatpush.bf16.msra.mxu0 %v920
        %1295 = vmatmul.bf16.gmra.mxu0 %v425
        %v1296 = vpop.f32.mrf.mxu0
        %v1297 = vadd.f32 %v1278, %v1296
        %v1298 = vpop.f32.mrf.mxu0
        %v1299 = vadd.f32 %v1280, %v1298
        %1300 = vmatmul.bf16.gmra.mxu0 %v429
        %v1301 = vpop.f32.mrf.mxu0
        %v1302 = vadd.f32 %v1283, %v1301
        %v1303 = vpop.f32.mrf.mxu0
        %v1304 = vadd.f32 %v1285, %v1303
        %1305 = vdwg.mxu0
        %1306 = vmatpush.bf16.msra.mxu0 %v853
        %1307 = vmatpush.bf16.msra.mxu0 %v849
        %1308 = vmatpush.bf16.msra.mxu0 %v845
        %1309 = vmatpush.bf16.msra.mxu0 %v841
        %1310 = vmatpush.bf16.msra.mxu0 %v837
        %1311 = vmatpush.bf16.msra.mxu0 %v833
        %1312 = vmatpush.bf16.msra.mxu0 %v829
        %1313 = vmatpush.bf16.msra.mxu0 %v825
        %1314 = vmatmul.bf16.gmra.mxu0 %v422
        %v1315 = vpop.f32.mrf.mxu0
        %v1316 = vadd.f32 0.0, %v1315
        %v1317 = vpop.f32.mrf.mxu0
        %v1318 = vadd.f32 0.0, %v1317
        %1319 = vmatmul.bf16.gmra.mxu0 %v426
        %v1320 = vpop.f32.mrf.mxu0
        %v1321 = vadd.f32 0.0, %v1320
        %v1322 = vpop.f32.mrf.mxu0
        %v1323 = vadd.f32 0.0, %v1322
        %1324 = vdwg.mxu0
        %1325 = vmatpush.bf16.msra.mxu0 %v885
        %1326 = vmatpush.bf16.msra.mxu0 %v881
        %1327 = vmatpush.bf16.msra.mxu0 %v877
        %1328 = vmatpush.bf16.msra.mxu0 %v873
        %1329 = vmatpush.bf16.msra.mxu0 %v869
        %1330 = vmatpush.bf16.msra.mxu0 %v865
        %1331 = vmatpush.bf16.msra.mxu0 %v861
        %1332 = vmatpush.bf16.msra.mxu0 %v857
        %1333 = vmatmul.bf16.gmra.mxu0 %v423
        %v1334 = vpop.f32.mrf.mxu0
        %v1335 = vadd.f32 %v1316, %v1334
        %v1336 = vpop.f32.mrf.mxu0
        %v1337 = vadd.f32 %v1318, %v1336
        %1338 = vmatmul.bf16.gmra.mxu0 %v427
        %v1339 = vpop.f32.mrf.mxu0
        %v1340 = vadd.f32 %v1321, %v1339
        %v1341 = vpop.f32.mrf.mxu0
        %v1342 = vadd.f32 %v1323, %v1341
        %1343 = vdwg.mxu0
        %1344 = vmatpush.bf16.msra.mxu0 %v917
        %1345 = vmatpush.bf16.msra.mxu0 %v913
        %1346 = vmatpush.bf16.msra.mxu0 %v909
        %1347 = vmatpush.bf16.msra.mxu0 %v905
        %1348 = vmatpush.bf16.msra.mxu0 %v901
        %1349 = vmatpush.bf16.msra.mxu0 %v897
        %1350 = vmatpush.bf16.msra.mxu0 %v893
        %1351 = vmatpush.bf16.msra.mxu0 %v889
        %1352 = vmatmul.bf16.gmra.mxu0 %v424
        %v1353 = vpop.f32.mrf.mxu0
        %v1354 = vadd.f32 %v1335, %v1353
        %v1355 = vpop.f32.mrf.mxu0
        %v1356 = vadd.f32 %v1337, %v1355
        %1357 = vmatmul.bf16.gmra.mxu0 %v428
        %v1358 = vpop.f32.mrf.mxu0
        %v1359 = vadd.f32 %v1340, %v1358
        %v1360 = vpop.f32.mrf.mxu0
        %v1361 = vadd.f32 %v1342, %v1360
        %1362 = vdwg.mxu0
        %1363 = vmatpush.bf16.msra.mxu0 %v949
        %1364 = vmatpush.bf16.msra.mxu0 %v945
        %1365 = vmatpush.bf16.msra.mxu0 %v941
        %1366 = vmatpush.bf16.msra.mxu0 %v937
        %1367 = vmatpush.bf16.msra.mxu0 %v933
        %1368 = vmatpush.bf16.msra.mxu0 %v929
        %1369 = vmatpush.bf16.msra.mxu0 %v925
        %1370 = vmatpush.bf16.msra.mxu0 %v921
        %1371 = vmatmul.bf16.gmra.mxu0 %v425
        %v1372 = vpop.f32.mrf.mxu0
        %v1373 = vadd.f32 %v1354, %v1372
        %v1374 = vpop.f32.mrf.mxu0
        %v1375 = vadd.f32 %v1356, %v1374
        %1376 = vmatmul.bf16.gmra.mxu0 %v429
        %v1377 = vpop.f32.mrf.mxu0
        %v1378 = vadd.f32 %v1359, %v1377
        %v1379 = vpop.f32.mrf.mxu0
        %v1380 = vadd.f32 %v1361, %v1379
        %1381 = vdwg.mxu0
        %v1382 = vadd.f32 %v246, %v1145
        %v1383 = vadd.f32 %v247, %v1221
        %v1384 = vadd.f32 %v248, %v1297
        %v1385 = vadd.f32 %v249, %v1373
        %v1386 = vadd.f32 %v250, %v1147
        %v1387 = vadd.f32 %v251, %v1223
        %v1388 = vadd.f32 %v252, %v1299
        %v1389 = vadd.f32 %v253, %v1375
        %v1390 = vadd.f32 %v254, %v1150
        %v1391 = vadd.f32 %v255, %v1226
        %v1392 = vadd.f32 %v256, %v1302
        %v1393 = vadd.f32 %v257, %v1378
        %v1394 = vadd.f32 %v258, %v1152
        %v1395 = vadd.f32 %v259, %v1228
        %v1396 = vadd.f32 %v260, %v1304
        %v1397 = vadd.f32 %v261, %v1380
        %1398 = vst [vmem:[#allocation2] sm:$0xff] %v1382
        %1399 = vst [vmem:[#allocation2 + $0x8] sm:$0xff] %v1383
        %1400 = vst [vmem:[#allocation2 + $0x10] sm:$0xff] %v1384
        %1401 = vst [vmem:[#allocation2 + $0x18] sm:$0xff] %v1385
        %1402 = vst [vmem:[#allocation2 + $0x20] sm:$0xff] %v1386
        %1403 = vst [vmem:[#allocation2 + $0x28] sm:$0xff] %v1387
        %1404 = vst [vmem:[#allocation2 + $0x30] sm:$0xff] %v1388
        %1405 = vst [vmem:[#allocation2 + $0x38] sm:$0xff] %v1389
        %1406 = vst [vmem:[#allocation2 + $0x40] sm:$0xff] %v1390
        %1407 = vst [vmem:[#allocation2 + $0x48] sm:$0xff] %v1391
        %1408 = vst [vmem:[#allocation2 + $0x50] sm:$0xff] %v1392
        %1409 = vst [vmem:[#allocation2 + $0x58] sm:$0xff] %v1393
        %1410 = vst [vmem:[#allocation2 + $0x60] sm:$0xff] %v1394
        %1411 = vst [vmem:[#allocation2 + $0x68] sm:$0xff] %v1395
        %1412 = vst [vmem:[#allocation2 + $0x70] sm:$0xff] %v1396
        %1413 = vst [vmem:[#allocation2 + $0x78] sm:$0xff] %v1397
        // Predicated region
        $region41: #{tpu_custom_call.1} parent=27 // pred_check
          %p1414 = pneg %p226
        $region42: #{tpu_custom_call.1} parent=27 // pred_check_branch
          %1416 = sbr.rel (%p1414) target = $region44
        $region43: #{tpu_custom_call.1} parent=27 // pred_region
          %v1417 = vld [vmem:[#allocation2] sm:$0xff]
          %v1418 = vld [vmem:[#allocation2 + $0x8] sm:$0xff]
          %v1419 = vld [vmem:[#allocation2 + $0x10] sm:$0xff]
          %v1420 = vld [vmem:[#allocation2 + $0x18] sm:$0xff]
          %v1421 = vld [vmem:[#allocation2 + $0x20] sm:$0xff]
          %v1422 = vld [vmem:[#allocation2 + $0x28] sm:$0xff]
          %v1423 = vld [vmem:[#allocation2 + $0x30] sm:$0xff]
          %v1424 = vld [vmem:[#allocation2 + $0x38] sm:$0xff]
          %v1425 = vld [vmem:[#allocation2 + $0x40] sm:$0xff]
          %v1426 = vld [vmem:[#allocation2 + $0x48] sm:$0xff]
          %v1427 = vld [vmem:[#allocation2 + $0x50] sm:$0xff]
          %v1428 = vld [vmem:[#allocation2 + $0x58] sm:$0xff]
          %v1429 = vld [vmem:[#allocation2 + $0x60] sm:$0xff]
          %v1430 = vld [vmem:[#allocation2 + $0x68] sm:$0xff]
          %v1431 = vld [vmem:[#allocation2 + $0x70] sm:$0xff]
          %v1432 = vld [vmem:[#allocation2 + $0x78] sm:$0xff]
          %v1433 = vpack.c.bf16 %v1418, %v1417
          %v1434 = vpack.c.bf16 %v1420, %v1419
          %v1435 = vpack.c.bf16 %v1422, %v1421
          %v1436 = vpack.c.bf16 %v1424, %v1423
          %v1437 = vpack.c.bf16 %v1426, %v1425
          %v1438 = vpack.c.bf16 %v1428, %v1427
          %v1439 = vpack.c.bf16 %v1430, %v1429
          %v1440 = vpack.c.bf16 %v1432, %v1431
          %1441 = vst [vmem:[%s219] sm:$0xff] %v1433
          %1442 = vst [vmem:[%s219 + $0x8] sm:$0xff] %v1434
          %1443 = vst [vmem:[%s219 + $0x10] sm:$0xff] %v1435
          %1444 = vst [vmem:[%s219 + $0x18] sm:$0xff] %v1436
          %1445 = vst [vmem:[%s219 + $0x20] sm:$0xff] %v1437
          %1446 = vst [vmem:[%s219 + $0x28] sm:$0xff] %v1438
          %1447 = vst [vmem:[%s219 + $0x30] sm:$0xff] %v1439
          %1448 = vst [vmem:[%s219 + $0x38] sm:$0xff] %v1440
        $region44: #{tpu_custom_call.1} parent=27 // pred_fallthru
          _
        %s1449 = sand.u32 %s105, 1
        %s1450 = scalar_lea.sflag [#allocation5], %s1449
        %s1451 = sand.u32 %s105, 1
        %s1452 = smul.addr %s1451, 64
        %s1453 = scalar_lea.vmem [#allocation8], %s1452
        // Predicated region
        $region45: #{tpu_custom_call.1} parent=27 // pred_check
          %p1454 = pneg %p115
        $region46: #{tpu_custom_call.1} parent=27 // pred_check_branch
          %1456 = sbr.rel (%p1454) target = $region48
        $region47: #{tpu_custom_call.1} parent=27 // pred_region
          %s1457 = smul.u32 4, %s25
          %s1458 = smul.u32 4, %s26
          %1460 = vsyncadd %s1450, 0
          %s1461 = smul.addr %s1457, 8
          %s1462 = sadd.s32 %s1458, %s1461
          %s1463 = smul.addr %s1462, 4
          %s1464 = scalar_lea.hbm %s2, %s1463
          %s1465 = sshll.u32 %s1453, 4
          %s1466 = int_to_ptr.vmem [resolvable:$true] %s1465
          %s1467 = sshll.u32 %s1464, 4
          %s1468 = int_to_ptr.hbm [resolvable:$true] %s1467
          %1473 = dma.vmem_to_hbm [thread:$0]  %s1466, 1024, %s1468, %s1450, 256, 512, 16
        $region48: #{tpu_custom_call.1} parent=27 // pred_fallthru
          _
      $region28: #{tpu_custom_call.1} parent=5 // pred_fallthru
        _
      %p1474 = scmp.le.s32.totalorder 2, %s15
      // Predicated region
      $region49: #{tpu_custom_call.1} parent=5 // pred_check
        %p1475 = pneg %p1474
      $region50: #{tpu_custom_call.1} parent=5 // pred_check_branch
        %1477 = sbr.rel (%p1475) target = $region52
      $region51: #{tpu_custom_call.1} parent=5 // pred_region
        %s1478 = ssub.s32 %s15, 2
        // Predicated region
        $region53: #{tpu_custom_call.1} parent=51 // pred_check
          %p1479 = pneg %p121
        $region54: #{tpu_custom_call.1} parent=51 // pred_check_branch
          %1481 = sbr.rel (%p1479) target = $region56
        $region55: #{tpu_custom_call.1} parent=51 // pred_region
          %s1482 = sand.u32 %s106, 1
          %s1483 = scalar_lea.sflag [#allocation5], %s1482
          %s1484 = sand.u32 %s106, 1
          %s1485 = smul.addr %s1484, 64
          %s1486 = scalar_lea.vmem [#allocation8], %s1485
          %1488 = dma.done %s1483, 1024
        $region56: #{tpu_custom_call.1} parent=51 // pred_fallthru
          _
      $region52: #{tpu_custom_call.1} parent=5 // pred_fallthru
        _
    $region6: #{tpu_custom_call.1} parent=1 // loop_footer
      %s19 = sadd.s32 1, %s15
    $region7: #{tpu_custom_call.1} parent=1 // loop_footer_branch
      %14 = sbr.rel target = $region3
    $region8: #{tpu_custom_call.1} parent=1 // loop_exit
      _
    %1489 = vsyncpa [#allocation4], 1
    %s1490 = scalar_lea.sflag [#allocation4], 1
    %1491 = vsyncpa %s1490, 1
    %1492 = vsyncpa [#allocation7], 1
    %s1493 = scalar_lea.sflag [#allocation7], 1
    %1494 = vsyncpa %s1493, 1
    %1495 = vsyncpa [#allocation5], 1
    %s1496 = scalar_lea.sflag [#allocation5], 1
    %1497 = vsyncpa %s1496, 1

</llo_original>
